<compile_context>
chip_gen: v6e
topology: v6e:2x2x1
jax: 0.10.0
libtpu: 0.0.40
codegen_flags: <defaults>
</compile_context>

<pallas_src>
import functools
import math

import jax
import jax.numpy as jnp
from jax.experimental import pallas as pl
from jax.experimental.pallas import tpu as pltpu

KSIZE = 16
STRIDE = 2
BN_EPS = 1e-5
LANE = 128


def _round_up(x, m):
    return (x + m - 1) // m * m


# ---------------------------------------------------------------------------
# Fused conv head: num_convs x [Conv1d(1,1,16,2) -> BN(eval) -> ReLU], then
# zoom, then lane-padding to Hp.  One pallas_call; stage intermediates never
# leave VMEM/vregs.  Conv matrices are bf16 (f32 accumulation).
# ---------------------------------------------------------------------------
def _head_kernel(*refs, num_convs, out_valid):
    scal_ref = refs[0]                    # SMEM (2 + 3*num_convs,) f32
    x_ref = refs[1]                       # (N, L0) f32
    w_refs = refs[2:2 + num_convs]        # banded conv matrices (bf16)
    o_ref = refs[2 + num_convs]           # (N, Hp) f32, lane-dense

    # Input normalization folded in:  (X - last)/last == X*inv_last - 1
    h = x_ref[...] * scal_ref[0] - 1.0
    for s in range(num_convs):            # static unroll over conv stages
        y = jnp.dot(h.astype(jnp.bfloat16), w_refs[s][...],
                    preferred_element_type=jnp.float32)
        # conv bias, eval-mode BatchNorm1d folded to scale/shift, then ReLU
        y = (y + scal_ref[2 + 3 * s]) * scal_ref[3 + 3 * s] + scal_ref[4 + 3 * s]
        h = jnp.maximum(y, 0.0)
    # zoom applied AFTER the last ReLU (zoom*relu(y) != relu(zoom*y)), then
    # zero the lane-padding columns so the LSTM input is exactly zero-padded.
    h = h * scal_ref[1]
    col = jax.lax.broadcasted_iota(jnp.int32, h.shape, 1)
    o_ref[...] = jnp.where(col < out_valid, h, 0.0)


def _conv_matrix(w, l_in, l_out):
    # Dense banded matrix for Conv1d(1,1,KSIZE,STRIDE):  M[i, j] = w[i - 2*j]
    i = jnp.arange(l_in)[:, None]
    j = jnp.arange(l_out)[None, :]
    k = i - STRIDE * j
    valid = (k >= 0) & (k < KSIZE)
    return jnp.where(valid, w[jnp.clip(k, 0, KSIZE - 1)], 0.0).astype(jnp.float32)


def head_forward(x, conv_params, bn_params, inv_last, zoom, hp):
    n, l0 = x.shape
    num_convs = len(conv_params)
    lens = [l0]
    for _ in range(num_convs):
        lens.append((lens[-1] - KSIZE) // STRIDE + 1)
    sz = lens[-1]

    mats = []
    for s, (w, _) in enumerate(conv_params):
        m = _conv_matrix(w, lens[s], lens[s + 1])
        if s == num_convs - 1 and hp != sz:
            # pad the LAST conv matrix with zero columns -> lane-dense output
            m = jnp.pad(m, ((0, 0), (0, hp - sz)))
        mats.append(m.astype(jnp.bfloat16))

    # [inv_last, zoom, (bias, bn_scale, bn_shift) per stage] -- BN stats folded.
    scal = [jnp.asarray(inv_last, jnp.float32), jnp.asarray(zoom, jnp.float32)]
    for (_, b), (gamma, beta, mean, var) in zip(conv_params, bn_params):
        bn_scale = gamma / jnp.sqrt(var + BN_EPS)
        bn_shift = beta - mean * bn_scale
        scal += [jnp.asarray(b, jnp.float32),
                 jnp.asarray(bn_scale, jnp.float32),
                 jnp.asarray(bn_shift, jnp.float32)]
    scalars = jnp.stack(scal)

    kernel = functools.partial(_head_kernel, num_convs=num_convs, out_valid=sz)
    return pl.pallas_call(
        kernel,
        out_shape=jax.ShapeDtypeStruct((n, hp), jnp.float32),
        grid=(1,),
        in_specs=[pl.BlockSpec(memory_space=pltpu.SMEM),
                  pl.BlockSpec((n, l0), lambda i: (0, 0))]
                + [pl.BlockSpec(m.shape, lambda i: (0, 0)) for m in mats],
        out_specs=pl.BlockSpec((n, hp), lambda i: (0, 0)),
    )(scalars, x, *mats)


# ---------------------------------------------------------------------------
# Fused BasicLSTM chain: grid = (num_iter,) only.  All NL layer weights stay
# VMEM-resident (constant index maps -> fetched once, never re-streamed), and
# the num_lstms*num_layers layer chain is a static in-kernel loop.
# Per layer:
#   1. hoisted input projection  xg = Y @ Wih + b   (one (T,Hp)x(Hp,4Hp) matmul)
#   2. statically-unrolled time loop with only h@Whh + gate math on the serial
#      critical path; per-step h written in place into the sequence scratch
#      (its old row was already consumed by step 1).
# (h, c) per-layer states live in VMEM scratch so module m reads module m-1's
# final states, exactly like the PyTorch chaining of (hn, cn).
# ---------------------------------------------------------------------------
def _lstm_chain_kernel(x_ref, wih_ref, whh_ref, b_ref, h0_ref, c0_ref,
                       o_ref, hn_ref, cn_ref,
                       y_sc, xg_sc, h_sc, c_sc,
                       *, num_layers, num_lstms, hidden, seq_len):
    # Every outer iteration restarts from (zoom*X, h0, c0), like PyTorch.
    y_sc[...] = x_ref[...]
    h_sc[...] = h0_ref[...]
    c_sc[...] = c0_ref[...]

    nl = num_lstms * num_layers
    for g in range(nl):                   # static unroll over layers
        lm = g % num_layers               # layer index inside current nn.LSTM

        # Hoisted input projection (bf16 MXU matmul, f32 accumulate) + bias.
        xg_sc[...] = (
            jnp.dot(y_sc[...].astype(jnp.bfloat16), wih_ref[g],
                    preferred_element_type=jnp.float32)
            + b_ref[g])

        h_prev = h_sc[lm]                 # (1, Hp) initial state for this layer
        c_prev = c_sc[lm]

        for t in range(seq_len):          # static unroll: T is small
            gates = xg_sc[t:t + 1, :] + jnp.dot(
                h_prev.astype(jnp.bfloat16), whh_ref[g],
                preferred_element_type=jnp.float32)
            # Gates packed as (i, f, o, g): one wide sigmoid + one tanh.
            sig = jax.nn.sigmoid(gates[:, :3 * hidden])
            i_g = sig[:, 0 * hidden:1 * hidden]
            f_g = sig[:, 1 * hidden:2 * hidden]
            o_g = sig[:, 2 * hidden:3 * hidden]
            g_g = jnp.tanh(gates[:, 3 * hidden:])
            c_prev = f_g * c_prev + i_g * g_g
            h_prev = o_g * jnp.tanh(c_prev)
            y_sc[t:t + 1, :] = h_prev     # in-place: row t already consumed

        h_sc[lm] = h_prev                 # feeds layer lm of the next module
        c_sc[lm] = c_prev

    @pl.when(pl.program_id(0) == pl.num_programs(0) - 1)
    def _():
        o_ref[...] = y_sc[...]
        hn_ref[...] = h_sc[...]
        cn_ref[...] = c_sc[...]


def lstm_chain(x_seq, wih_all, whh_all, b_all, h0, c0, *, num_layers, num_iter):
    t_len, hp = x_seq.shape
    nl = wih_all.shape[0]
    num_lstms = nl // num_layers

    flops = 2 * num_iter * nl * (2 * t_len * hp * 4 * hp)     # ih proj + hh
    transc = num_iter * nl * t_len * 5 * hp
    # Weights are VMEM-resident: one fetch total (not num_iter fetches).
    bytes_acc = (nl * (2 * hp * 4 * hp * 2 + 4 * hp * 4)
                 + 4 * (2 * t_len * hp + 4 * num_layers * hp))

    kernel = functools.partial(_lstm_chain_kernel, num_layers=num_layers,
                               num_lstms=num_lstms, hidden=hp, seq_len=t_len)
    return pl.pallas_call(
        kernel,
        out_shape=(jax.ShapeDtypeStruct((t_len, hp), jnp.float32),
                   jax.ShapeDtypeStruct((num_layers, 1, hp), jnp.float32),
                   jax.ShapeDtypeStruct((num_layers, 1, hp), jnp.float32)),
        grid=(num_iter,),
        in_specs=[
            # constant index maps -> each operand DMA'd into VMEM exactly once
            pl.BlockSpec((t_len, hp), lambda it: (0, 0)),
            pl.BlockSpec((nl, hp, 4 * hp), lambda it: (0, 0, 0)),
            pl.BlockSpec((nl, hp, 4 * hp), lambda it: (0, 0, 0)),
            pl.BlockSpec((nl, 1, 4 * hp), lambda it: (0, 0, 0)),
            pl.BlockSpec((num_layers, 1, hp), lambda it: (0, 0, 0)),
            pl.BlockSpec((num_layers, 1, hp), lambda it: (0, 0, 0)),
        ],
        out_specs=(
            pl.BlockSpec((t_len, hp), lambda it: (0, 0)),
            pl.BlockSpec((num_layers, 1, hp), lambda it: (0, 0, 0)),
            pl.BlockSpec((num_layers, 1, hp), lambda it: (0, 0, 0)),
        ),
        scratch_shapes=[
            pltpu.VMEM((t_len, hp), jnp.float32),          # current sequence
            pltpu.VMEM((t_len, 4 * hp), jnp.float32),      # hoisted x@Wih + b
            pltpu.VMEM((num_layers, 1, hp), jnp.float32),  # h states
            pltpu.VMEM((num_layers, 1, hp), jnp.float32),  # c states
        ],
        compiler_params=pltpu.CompilerParams(
            dimension_semantics=("arbitrary",),            # serial recurrence
            vmem_limit_bytes=32 * 1024 * 1024),
        cost_estimate=pl.CostEstimate(flops=flops, transcendentals=transc,
                                      bytes_accessed=bytes_acc),
    )(x_seq, wih_all, whh_all, b_all, h0, c0)


# ---------------------------------------------------------------------------
# Full MMM forward
# ---------------------------------------------------------------------------
def mmm_forward(X, h0, c0, params):
    # X: (N, 1, L) f32 (PyTorch NCL, C=1); h0/c0: (num_layers, 1, sz) f32
    n, c, l = X.shape
    assert c == 1
    x = X.reshape(n, l)
    last = X.reshape(-1)[-1]
    inv_last = 1.0 / last   # matches the PyTorch division (inf/nan if last == 0)

    sz = params["sz"]
    lout = l
    for _ in range(len(params["convs"])):
        lout = (lout - KSIZE) // STRIDE + 1
    assert lout == sz
    hp = _round_up(sz, LANE)

    # Head emits zoomed, lane-dense (n, Hp) LSTM input directly.
    x_seq = head_forward(x, params["convs"], params["bn"], inv_last,
                         params["zoom"], hp)

    pad = hp - sz
    if pad:
        h0 = jnp.pad(h0, ((0, 0), (0, 0), (0, pad)))
        c0 = jnp.pad(c0, ((0, 0), (0, 0), (0, pad)))

    o, hn, cn = lstm_chain(x_seq, params["wih"], params["whh"], params["b"],
                           h0, c0, num_layers=params["num_layers"],
                           num_iter=params["num_iter"])
    o = o[:, :sz][:, None, :]          # (T, 1, sz) seq-first, batch = 1
    hn = hn[:, :, :sz]
    cn = cn[:, :, :sz]
    return o, (hn, cn)


# ---------------------------------------------------------------------------
# Deterministic parameter init (PyTorch default uniform ranges), pre-packed:
# LSTM weights transposed, gate-reordered (i,f,g,o)->(i,f,o,g), gate-padded to
# Hp and cast to bf16 once here.
# ---------------------------------------------------------------------------
_GATE_PERM = (0, 1, 3, 2)   # PyTorch (i, f, g, o) -> packed (i, f, o, g)


def _pad_gate_matrix(w_t, sz, hp):
    # w_t: (sz, 4*sz) with gate blocks [i,f,g,o] along columns
    # -> (hp, 4*hp), reordered to [i,f,o,g], each gate block lane-aligned at hp.
    w4 = w_t.reshape(sz, 4, sz)[:, _GATE_PERM, :]
    out = jnp.zeros((hp, 4, hp), jnp.float32)
    out = out.at[:sz, :, :sz].set(w4)
    return out.reshape(hp, 4 * hp)


def _pad_gate_vector(b, sz, hp):
    b4 = b.reshape(4, sz)[_GATE_PERM, :]
    out = jnp.zeros((4, hp), jnp.float32)
    out = out.at[:, :sz].set(b4)
    return out.reshape(1, 4 * hp)


def init_params(key, num_convs, sz, num_layers, num_lstms, zoom, num_iter):
    params = {"zoom": zoom, "num_iter": num_iter, "num_layers": num_layers,
              "num_lstms": num_lstms, "sz": sz}

    convs, bn = [], []
    for _ in range(num_convs):
        key, k1, k2 = jax.random.split(key, 3)
        bound = 1.0 / math.sqrt(KSIZE)   # fan_in = C_in * K = 16
        w = jax.random.uniform(k1, (KSIZE,), jnp.float32, -bound, bound)
        b = jax.random.uniform(k2, (), jnp.float32, -bound, bound)
        convs.append((w, b))
        # BatchNorm1d(1) eval parameters/stats: (gamma, beta, mean, var)
        bn.append((jnp.float32(1.0), jnp.float32(0.0),
                   jnp.float32(0.0), jnp.float32(1.0)))
    params["convs"] = convs
    params["bn"] = bn

    hp = _round_up(sz, LANE)
    bound = 1.0 / math.sqrt(sz)
    wih_all, whh_all, b_all = [], [], []
    for _ in range(num_lstms):
        for _ in range(num_layers):
            key, k1, k2, k3, k4 = jax.random.split(key, 5)
            w_ih = jax.random.uniform(k1, (4 * sz, sz), jnp.float32, -bound, bound)
            w_hh = jax.random.uniform(k2, (4 * sz, sz), jnp.float32, -bound, bound)
            b_ih = jax.random.uniform(k3, (4 * sz,), jnp.float32, -bound, bound)
            b_hh = jax.random.uniform(k4, (4 * sz,), jnp.float32, -bound, bound)
            wih_all.append(_pad_gate_matrix(w_ih.T, sz, hp))
            whh_all.append(_pad_gate_matrix(w_hh.T, sz, hp))
            b_all.append(_pad_gate_vector(b_ih + b_hh, sz, hp))
    # bf16 MXU weights (f32 accumulation in-kernel), f32 biases / states.
    params["wih"] = jnp.stack(wih_all).astype(jnp.bfloat16)   # (NL, Hp, 4Hp)
    params["whh"] = jnp.stack(whh_all).astype(jnp.bfloat16)   # (NL, Hp, 4Hp)
    params["b"] = jnp.stack(b_all)                            # (NL, 1, 4Hp) f32
    return params


if __name__ == "__main__":
    # Small config consistent with MMM's structure
    NUM_CONVS = 3
    SZ = 32          # LSTM hidden size (128 in the original)
    NUM_LAYERS = 2   # layers per nn.LSTM (4 in the original)
    NUM_LSTMS = 2    # chained nn.LSTM modules (8 in the original)
    NUM_ITER = 2     # outer iterations (4 in the original)
    ZOOM = 1.0
    N = 8            # conv batch == LSTM sequence length

    # Input length such that 3 convs (k=16, s=2) leave exactly SZ features:
    L = SZ
    for _ in range(NUM_CONVS):
        L = (L - 1) * STRIDE + KSIZE   # -> 354 for SZ=32

    key = jax.random.PRNGKey(0)
    kx, kh, kc, kp = jax.random.split(key, 4)
    X = jax.random.normal(kx, (N, 1, L), jnp.float32)
    h0 = jax.random.normal(kh, (NUM_LAYERS, 1, SZ), jnp.float32)
    c0 = jax.random.normal(kc, (NUM_LAYERS, 1, SZ), jnp.float32)
    params = init_params(kp, NUM_CONVS, SZ, NUM_LAYERS, NUM_LSTMS, ZOOM, NUM_ITER)

    o, (hn, cn) = mmm_forward(X, h0, c0, params)
    jax.block_until_ready((o, hn, cn))
    assert o.shape == (N, 1, SZ)
    assert hn.shape == (NUM_LAYERS, 1, SZ)
    assert cn.shape == (NUM_LAYERS, 1, SZ)
    print("KERNEL_OK")
</pallas_src>

<mosaic_0001>
module attributes {stable_mosaic.version = 11 : i64} {
  func.func @_head_kernel(%arg0: i32, %arg1: memref<11xf32, #tpu.memory_space<smem>>, %arg2: memref<8x354xf32, #tpu.memory_space<vmem>>, %arg3: memref<354x170xbf16, #tpu.memory_space<vmem>>, %arg4: memref<170x78xbf16, #tpu.memory_space<vmem>>, %arg5: memref<78x128xbf16, #tpu.memory_space<vmem>>, %arg6: memref<8x128xf32, #tpu.memory_space<vmem>>) attributes {dimension_semantics = [#tpu.dimension_semantics<arbitrary>], iteration_bounds = array<i64: 1>, scalar_prefetch = 0 : i64, scratch_operands = 0 : i64, tpu.core_type = #tpu.core_type<tc>, window_params = [{transform_indices = @transform_0, window_bounds = array<i64: 11>}, {pipeline_mode = #tpu.pipeline_mode<synchronous>, transform_indices = @transform_1, window_bounds = array<i64: 8, 354>}, {pipeline_mode = #tpu.pipeline_mode<synchronous>, transform_indices = @transform_2, window_bounds = array<i64: 354, 170>}, {pipeline_mode = #tpu.pipeline_mode<synchronous>, transform_indices = @transform_3, window_bounds = array<i64: 170, 78>}, {pipeline_mode = #tpu.pipeline_mode<synchronous>, transform_indices = @transform_4, window_bounds = array<i64: 78, 128>}, {pipeline_mode = #tpu.pipeline_mode<synchronous>, transform_indices = @transform_5, window_bounds = array<i64: 8, 128>}]} {
    %c0 = arith.constant 0 : index
    %c0_0 = arith.constant 0 : index
    %0 = vector.load %arg2[%c0, %c0_0] : memref<8x354xf32, #tpu.memory_space<vmem>>, vector<8x354xf32>
    %c0_1 = arith.constant 0 : index
    %1 = memref.load %arg1[%c0_1] : memref<11xf32, #tpu.memory_space<smem>>
    %2 = vector.broadcast %1 : f32 to vector<8x354xf32>
    %3 = arith.mulf %0, %2 : vector<8x354xf32>
    %cst = arith.constant 1.000000e+00 : f32
    %4 = vector.broadcast %cst : f32 to vector<8x354xf32>
    %5 = arith.subf %3, %4 : vector<8x354xf32>
    %6 = arith.truncf %5 : vector<8x354xf32> to vector<8x354xbf16>
    %c0_2 = arith.constant 0 : index
    %c0_3 = arith.constant 0 : index
    %7 = vector.load %arg3[%c0_2, %c0_3] : memref<354x170xbf16, #tpu.memory_space<vmem>>, vector<354x170xbf16>
    %cst_4 = arith.constant dense<0.000000e+00> : vector<8x170xf32>
    %8 = tpu.matmul %6, %7, %cst_4 {dimension_numbers = #tpu.dot_dimension_numbers<[1], [0], [0], [1], [0, 0, 1, 1], [], []>} : vector<8x354xbf16>, vector<354x170xbf16>, vector<8x170xf32> -> vector<8x170xf32>
    %c2 = arith.constant 2 : index
    %9 = memref.load %arg1[%c2] : memref<11xf32, #tpu.memory_space<smem>>
    %10 = vector.broadcast %9 : f32 to vector<8x170xf32>
    %11 = arith.addf %8, %10 : vector<8x170xf32>
    %c3 = arith.constant 3 : index
    %12 = memref.load %arg1[%c3] : memref<11xf32, #tpu.memory_space<smem>>
    %13 = vector.broadcast %12 : f32 to vector<8x170xf32>
    %14 = arith.mulf %11, %13 : vector<8x170xf32>
    %c4 = arith.constant 4 : index
    %15 = memref.load %arg1[%c4] : memref<11xf32, #tpu.memory_space<smem>>
    %16 = vector.broadcast %15 : f32 to vector<8x170xf32>
    %17 = arith.addf %14, %16 : vector<8x170xf32>
    %cst_5 = arith.constant 0.000000e+00 : f32
    %18 = vector.broadcast %cst_5 : f32 to vector<8x170xf32>
    %19 = arith.maximumf %17, %18 : vector<8x170xf32>
    %20 = arith.truncf %19 : vector<8x170xf32> to vector<8x170xbf16>
    %c0_6 = arith.constant 0 : index
    %c0_7 = arith.constant 0 : index
    %21 = vector.load %arg4[%c0_6, %c0_7] : memref<170x78xbf16, #tpu.memory_space<vmem>>, vector<170x78xbf16>
    %cst_8 = arith.constant dense<0.000000e+00> : vector<8x78xf32>
    %22 = tpu.matmul %20, %21, %cst_8 {dimension_numbers = #tpu.dot_dimension_numbers<[1], [0], [0], [1], [0, 0, 1, 1], [], []>} : vector<8x170xbf16>, vector<170x78xbf16>, vector<8x78xf32> -> vector<8x78xf32>
    %c5 = arith.constant 5 : index
    %23 = memref.load %arg1[%c5] : memref<11xf32, #tpu.memory_space<smem>>
    %24 = vector.broadcast %23 : f32 to vector<8x78xf32>
    %25 = arith.addf %22, %24 : vector<8x78xf32>
    %c6 = arith.constant 6 : index
    %26 = memref.load %arg1[%c6] : memref<11xf32, #tpu.memory_space<smem>>
    %27 = vector.broadcast %26 : f32 to vector<8x78xf32>
    %28 = arith.mulf %25, %27 : vector<8x78xf32>
    %c7 = arith.constant 7 : index
    %29 = memref.load %arg1[%c7] : memref<11xf32, #tpu.memory_space<smem>>
    %30 = vector.broadcast %29 : f32 to vector<8x78xf32>
    %31 = arith.addf %28, %30 : vector<8x78xf32>
    %cst_9 = arith.constant 0.000000e+00 : f32
    %32 = vector.broadcast %cst_9 : f32 to vector<8x78xf32>
    %33 = arith.maximumf %31, %32 : vector<8x78xf32>
    %34 = arith.truncf %33 : vector<8x78xf32> to vector<8x78xbf16>
    %c0_10 = arith.constant 0 : index
    %c0_11 = arith.constant 0 : index
    %35 = vector.load %arg5[%c0_10, %c0_11] : memref<78x128xbf16, #tpu.memory_space<vmem>>, vector<78x128xbf16>
    %cst_12 = arith.constant dense<0.000000e+00> : vector<8x128xf32>
    %36 = tpu.matmul %34, %35, %cst_12 {dimension_numbers = #tpu.dot_dimension_numbers<[1], [0], [0], [1], [0, 0, 1, 1], [], []>} : vector<8x78xbf16>, vector<78x128xbf16>, vector<8x128xf32> -> vector<8x128xf32>
    %c8 = arith.constant 8 : index
    %37 = memref.load %arg1[%c8] : memref<11xf32, #tpu.memory_space<smem>>
    %38 = vector.broadcast %37 : f32 to vector<8x128xf32>
    %39 = arith.addf %36, %38 : vector<8x128xf32>
    %c9 = arith.constant 9 : index
    %40 = memref.load %arg1[%c9] : memref<11xf32, #tpu.memory_space<smem>>
    %41 = vector.broadcast %40 : f32 to vector<8x128xf32>
    %42 = arith.mulf %39, %41 : vector<8x128xf32>
    %c10 = arith.constant 10 : index
    %43 = memref.load %arg1[%c10] : memref<11xf32, #tpu.memory_space<smem>>
    %44 = vector.broadcast %43 : f32 to vector<8x128xf32>
    %45 = arith.addf %42, %44 : vector<8x128xf32>
    %cst_13 = arith.constant 0.000000e+00 : f32
    %46 = vector.broadcast %cst_13 : f32 to vector<8x128xf32>
    %47 = arith.maximumf %45, %46 : vector<8x128xf32>
    %c1 = arith.constant 1 : index
    %48 = memref.load %arg1[%c1] : memref<11xf32, #tpu.memory_space<smem>>
    %49 = vector.broadcast %48 : f32 to vector<8x128xf32>
    %50 = arith.mulf %47, %49 : vector<8x128xf32>
    %51 = tpu.iota {dimensions = array<i32: 1>} : vector<8x128xi32>
    %c32_i32 = arith.constant 32 : i32
    %52 = vector.broadcast %c32_i32 : i32 to vector<8x128xi32>
    %53 = arith.cmpi slt, %51, %52 : vector<8x128xi32>
    %cst_14 = arith.constant 0.000000e+00 : f32
    %54 = vector.broadcast %cst_14 : f32 to vector<8x128xf32>
    %55 = arith.select %53, %50, %54 : vector<8x128xi1>, vector<8x128xf32>
    %c0_15 = arith.constant 0 : index
    %c0_16 = arith.constant 0 : index
    %56 = vector.load %arg6[%c0_15, %c0_16] : memref<8x128xf32, #tpu.memory_space<vmem>>, vector<8x128xf32>
    tpu.vector_store %arg6[%c0_15, %c0_16], %55 {strides = array<i32>} : memref<8x128xf32, #tpu.memory_space<vmem>>, vector<8x128xf32>,
    return
  }
  func.func @transform_0(%arg0: i32) -> i32 {
    %c0_i32 = arith.constant 0 : i32
    %c0_i32_0 = arith.constant 0 : i32
    return %c0_i32 : i32
  }
  func.func @transform_1(%arg0: i32) -> (i32, i32) {
    %c0_i32 = arith.constant 0 : i32
    %c0_i32_0 = arith.constant 0 : i32
    %c0_i32_1 = arith.constant 0 : i32
    return %c0_i32, %c0_i32_0 : i32, i32
  }
  func.func @transform_2(%arg0: i32) -> (i32, i32) {
    %c0_i32 = arith.constant 0 : i32
    %c0_i32_0 = arith.constant 0 : i32
    %c0_i32_1 = arith.constant 0 : i32
    return %c0_i32, %c0_i32_0 : i32, i32
  }
  func.func @transform_3(%arg0: i32) -> (i32, i32) {
    %c0_i32 = arith.constant 0 : i32
    %c0_i32_0 = arith.constant 0 : i32
    %c0_i32_1 = arith.constant 0 : i32
    return %c0_i32, %c0_i32_0 : i32, i32
  }
  func.func @transform_4(%arg0: i32) -> (i32, i32) {
    %c0_i32 = arith.constant 0 : i32
    %c0_i32_0 = arith.constant 0 : i32
    %c0_i32_1 = arith.constant 0 : i32
    return %c0_i32, %c0_i32_0 : i32, i32
  }
  func.func @transform_5(%arg0: i32) -> (i32, i32) {
    %c0_i32 = arith.constant 0 : i32
    %c0_i32_0 = arith.constant 0 : i32
    %c0_i32_1 = arith.constant 0 : i32
    return %c0_i32, %c0_i32_0 : i32, i32
  }
}

</mosaic_0001>

<llo_original>
// kernel: tpu_custom_call.1
$region0: #{tpu_custom_call.1}
  #allocation0 [shape = 'u32[]', space=smem, size = 0x4, offset = 0x4, fixed_abs, tag = 'smem constant byte address 0x4 - core index']
  #allocation1 [shape = 'u32[144,128]{1,0:T(1,128)}', space=vmem, size = 0x12000, scoped, tag = 'internal scratch']
  %s0 = inlined_call_operand.vmem [shape: f32[11], index: 0, kind: input, shape index: {}]
  %s1 = inlined_call_operand.vmem [shape: f32[8,354], index: 1, kind: input, shape index: {}]
  %s2 = inlined_call_operand.vmem [shape: bf16[354,170], index: 2, kind: input, shape index: {}]
  %s3 = inlined_call_operand.vmem [shape: bf16[170,78], index: 3, kind: input, shape index: {}]
  %s4 = inlined_call_operand.vmem [shape: bf16[78,128], index: 4, kind: input, shape index: {}]
  %s5 = inlined_call_operand.hbm [shape: f32[8,128], index: 5, kind: output, shape index: {}]
  %s6 = sld [smem:[#allocation0]]
  $region34: #{tpu_custom_call.1} parent=0
    _
  %s8 = ssub.s32 1, %s6
  %s9 = scalar_select 0, %s8, %s6
  $region1: #{tpu_custom_call.1} parent=0
    #allocation2 [shape = 'u8[512]{0}', space=smem, size = 0x200, scoped, tag = 'input window, operand 0, single buffered']
    #allocation3 [shape = 's32[1]{0}', space=sflag, size = 0x4, scoped, tag = 'scoped memory for tpu_custom_call.1']
    #allocation4 [shape = 's32[1]{0}', space=sflag, size = 0x4, scoped, tag = 'scoped memory for tpu_custom_call.1']
    #allocation5 [shape = 'u8[4096]{0}', space=vmem, size = 0x1000, scoped, tag = 'output window, operand 0, single buffered']
    %10 = vsyncpa [#allocation4], 0
    %11 = vsyncpa [#allocation3], 0
    // Predicated region
    $region2: #{tpu_custom_call.1} parent=1 // pred_check
      _
    $region3: #{tpu_custom_call.1} parent=1 // pred_check_branch
      %13 = sbr.rel (0) target = $region5
    $region4: #{tpu_custom_call.1} parent=1 // pred_region
      %s15 = ssub.s32 16, 16
      %16 = vsyncadd [#allocation4], %s15
      %s18 = sshll.u32 %s0, 4
      %s19 = int_to_ptr.vmem [resolvable:$true] %s18
      %21 = dma.vmem_to_smem %s19, 16, [#allocation2], [#allocation4]
    $region5: #{tpu_custom_call.1} parent=1 // pred_fallthru
      _
    // Predicated region
    $region6: #{tpu_custom_call.1} parent=1 // pred_check
      _
    $region7: #{tpu_custom_call.1} parent=1 // pred_check_branch
      %23 = sbr.rel (0) target = $region9
    $region8: #{tpu_custom_call.1} parent=1 // pred_region
      _
    $region9: #{tpu_custom_call.1} parent=1 // pred_fallthru
      _
    // Predicated region
    $region10: #{tpu_custom_call.1} parent=1 // pred_check
      _
    $region11: #{tpu_custom_call.1} parent=1 // pred_check_branch
      %25 = sbr.rel (0) target = $region13
    $region12: #{tpu_custom_call.1} parent=1 // pred_region
      _
    $region13: #{tpu_custom_call.1} parent=1 // pred_fallthru
      _
    // Predicated region
    $region14: #{tpu_custom_call.1} parent=1 // pred_check
      _
    $region15: #{tpu_custom_call.1} parent=1 // pred_check_branch
      %27 = sbr.rel (0) target = $region17
    $region16: #{tpu_custom_call.1} parent=1 // pred_region
      _
    $region17: #{tpu_custom_call.1} parent=1 // pred_fallthru
      _
    // Predicated region
    $region18: #{tpu_custom_call.1} parent=1 // pred_check
      _
    $region19: #{tpu_custom_call.1} parent=1 // pred_check_branch
      %29 = sbr.rel (0) target = $region21
    $region20: #{tpu_custom_call.1} parent=1 // pred_region
      _
    $region21: #{tpu_custom_call.1} parent=1 // pred_fallthru
      _
    // Predicated region
    $region22: #{tpu_custom_call.1} parent=1 // pred_check
      _
    $region23: #{tpu_custom_call.1} parent=1 // pred_check_branch
      %31 = sbr.rel (0) target = $region25
    $region24: #{tpu_custom_call.1} parent=1 // pred_region
      %32 = dma.done [#allocation4], 16
    $region25: #{tpu_custom_call.1} parent=1 // pred_fallthru
      _
    %33 = sfence
    %v35 = vld [vmem:[%s1] sm:$0xff]
    %v36 = vld [vmem:[%s1 + $0x8] sm:$0xff]
    %v37 = vld [vmem:[%s1 + $0x10] sm:$0xff]
    %s38 = sld [smem:[#allocation2]]
    %v39 = vstv %s38
    %v40 = vmul.f32 %v35, %v39
    %v41 = vmul.f32 %v36, %v39
    %v42 = vmul.f32 %v37, %v39
    %v43 = vsub.f32 %v40, 1.0
    %v44 = vsub.f32 %v41, 1.0
    %v45 = vsub.f32 %v42, 1.0
    %v46 = vpack.c.bf16 %v43, %v43
    %v47 = vpack.c.bf16 %v44, %v44
    %v48 = vpack.c.bf16 %v45, %v45
    %v49 = vld [vmem:[%s2] sm:$0xff]
    %v50 = vld [vmem:[%s2 + $0x8] sm:$0xff]
    %v51 = vld [vmem:[%s2 + $0x10] sm:$0xff]
    %v52 = vld [vmem:[%s2 + $0x18] sm:$0xff]
    %v53 = vld [vmem:[%s2 + $0x20] sm:$0xff]
    %v54 = vld [vmem:[%s2 + $0x28] sm:$0xff]
    %v55 = vld [vmem:[%s2 + $0x30] sm:$0xff]
    %v56 = vld [vmem:[%s2 + $0x38] sm:$0xff]
    %v57 = vld [vmem:[%s2 + $0x40] sm:$0xff]
    %v58 = vld [vmem:[%s2 + $0x48] sm:$0xff]
    %v59 = vld [vmem:[%s2 + $0x50] sm:$0xff]
    %v60 = vld [vmem:[%s2 + $0x58] sm:$0xff]
    %v61 = vld [vmem:[%s2 + $0x60] sm:$0xff]
    %v62 = vld [vmem:[%s2 + $0x68] sm:$0xff]
    %v63 = vld [vmem:[%s2 + $0x70] sm:$0xff]
    %v64 = vld [vmem:[%s2 + $0x78] sm:$0xff]
    %v65 = vld [vmem:[%s2 + $0x80] sm:$0xff]
    %v66 = vld [vmem:[%s2 + $0x88] sm:$0xff]
    %v67 = vld [vmem:[%s2 + $0x90] sm:$0xff]
    %v68 = vld [vmem:[%s2 + $0x98] sm:$0xff]
    %v69 = vld [vmem:[%s2 + $0xa0] sm:$0xff]
    %v70 = vld [vmem:[%s2 + $0xa8] sm:$0xff]
    %v71 = vld [vmem:[%s2 + $0xb0] sm:$0xff]
    %v72 = vld [vmem:[%s2 + $0xb8] sm:$0xff]
    %v73 = vld [vmem:[%s2 + $0xc0] sm:$0xff]
    %v74 = vld [vmem:[%s2 + $0xc8] sm:$0xff]
    %v75 = vld [vmem:[%s2 + $0xd0] sm:$0xff]
    %v76 = vld [vmem:[%s2 + $0xd8] sm:$0xff]
    %v77 = vld [vmem:[%s2 + $0xe0] sm:$0xff]
    %v78 = vld [vmem:[%s2 + $0xe8] sm:$0xff]
    %v79 = vld [vmem:[%s2 + $0xf0] sm:$0xff]
    %v80 = vld [vmem:[%s2 + $0xf8] sm:$0xff]
    %v81 = vld [vmem:[%s2 + $0x100] sm:$0xff]
    %v82 = vld [vmem:[%s2 + $0x108] sm:$0xff]
    %v83 = vld [vmem:[%s2 + $0x110] sm:$0xff]
    %v84 = vld [vmem:[%s2 + $0x118] sm:$0xff]
    %v85 = vld [vmem:[%s2 + $0x120] sm:$0xff]
    %v86 = vld [vmem:[%s2 + $0x128] sm:$0xff]
    %v87 = vld [vmem:[%s2 + $0x130] sm:$0xff]
    %v88 = vld [vmem:[%s2 + $0x138] sm:$0xff]
    %v89 = vld [vmem:[%s2 + $0x140] sm:$0xff]
    %v90 = vld [vmem:[%s2 + $0x148] sm:$0xff]
    %v91 = vld [vmem:[%s2 + $0x150] sm:$0xff]
    %v92 = vld [vmem:[%s2 + $0x158] sm:$0xff]
    %v93 = vld [vmem:[%s2 + $0x160] sm:$0x11]
    %s94 = sld [smem:[#allocation2 + $0x2]]
    %v95 = vstv %s94
    %v141 = vunpack.c.l.b16 %v49
    %v142 = vunpack.c.h.b16 %v49
    %v143 = vunpack.c.l.b16 %v50
    %v144 = vunpack.c.h.b16 %v50
    %v145 = vunpack.c.l.b16 %v51
    %v146 = vunpack.c.h.b16 %v51
    %v147 = vunpack.c.l.b16 %v52
    %v148 = vunpack.c.h.b16 %v52
    %v149 = vunpack.c.l.b16 %v53
    %v150 = vunpack.c.h.b16 %v53
    %v151 = vunpack.c.l.b16 %v54
    %v152 = vunpack.c.h.b16 %v54
    %v153 = vunpack.c.l.b16 %v55
    %v154 = vunpack.c.h.b16 %v55
    %v155 = vunpack.c.l.b16 %v56
    %v156 = vunpack.c.h.b16 %v56
    %v157 = vunpack.c.l.b16 %v57
    %v158 = vunpack.c.h.b16 %v57
    %v159 = vunpack.c.l.b16 %v58
    %v160 = vunpack.c.h.b16 %v58
    %v161 = vunpack.c.l.b16 %v59
    %v162 = vunpack.c.h.b16 %v59
    %v163 = vunpack.c.l.b16 %v60
    %v164 = vunpack.c.h.b16 %v60
    %v165 = vunpack.c.l.b16 %v61
    %v166 = vunpack.c.h.b16 %v61
    %v167 = vunpack.c.l.b16 %v62
    %v168 = vunpack.c.h.b16 %v62
    %v169 = vunpack.c.l.b16 %v63
    %v170 = vunpack.c.h.b16 %v63
    %v171 = vunpack.c.l.b16 %v64
    %v172 = vunpack.c.h.b16 %v64
    %v173 = vunpack.c.l.b16 %v65
    %v174 = vunpack.c.h.b16 %v65
    %v175 = vunpack.c.l.b16 %v66
    %v176 = vunpack.c.h.b16 %v66
    %v177 = vunpack.c.l.b16 %v67
    %v178 = vunpack.c.h.b16 %v67
    %v179 = vunpack.c.l.b16 %v68
    %v180 = vunpack.c.h.b16 %v68
    %v181 = vunpack.c.l.b16 %v69
    %v182 = vunpack.c.h.b16 %v69
    %v183 = vunpack.c.l.b16 %v70
    %v184 = vunpack.c.h.b16 %v70
    %v185 = vunpack.c.l.b16 %v71
    %v186 = vunpack.c.h.b16 %v71
    %v187 = vunpack.c.l.b16 %v72
    %v188 = vunpack.c.h.b16 %v72
    %v189 = vunpack.c.l.b16 %v73
    %v190 = vunpack.c.h.b16 %v73
    %v191 = vunpack.c.l.b16 %v74
    %v192 = vunpack.c.h.b16 %v74
    %v193 = vunpack.c.l.b16 %v75
    %v194 = vunpack.c.h.b16 %v75
    %v195 = vunpack.c.l.b16 %v76
    %v196 = vunpack.c.h.b16 %v76
    %v197 = vunpack.c.l.b16 %v77
    %v198 = vunpack.c.h.b16 %v77
    %v199 = vunpack.c.l.b16 %v78
    %v200 = vunpack.c.h.b16 %v78
    %v201 = vunpack.c.l.b16 %v79
    %v202 = vunpack.c.h.b16 %v79
    %v203 = vunpack.c.l.b16 %v80
    %v204 = vunpack.c.h.b16 %v80
    %v205 = vunpack.c.l.b16 %v81
    %v206 = vunpack.c.h.b16 %v81
    %v207 = vunpack.c.l.b16 %v82
    %v208 = vunpack.c.h.b16 %v82
    %v209 = vunpack.c.l.b16 %v83
    %v210 = vunpack.c.h.b16 %v83
    %v211 = vunpack.c.l.b16 %v84
    %v212 = vunpack.c.h.b16 %v84
    %v213 = vunpack.c.l.b16 %v85
    %v214 = vunpack.c.h.b16 %v85
    %v215 = vunpack.c.l.b16 %v86
    %v216 = vunpack.c.h.b16 %v86
    %v217 = vunpack.c.l.b16 %v87
    %v218 = vunpack.c.h.b16 %v87
    %v219 = vunpack.c.l.b16 %v88
    %v220 = vunpack.c.h.b16 %v88
    %v221 = vunpack.c.l.b16 %v89
    %v222 = vunpack.c.h.b16 %v89
    %v223 = vunpack.c.l.b16 %v90
    %v224 = vunpack.c.h.b16 %v90
    %v225 = vunpack.c.l.b16 %v91
    %v226 = vunpack.c.h.b16 %v91
    %v227 = vunpack.c.l.b16 %v92
    %v228 = vunpack.c.h.b16 %v92
    %v229 = vunpack.c.l.b16 %v93
    %v230 = vunpack.c.h.b16 %v93
    %v231 = vpack.c.b16 %v143, %v141
    %v232 = vpack.c.b16 %v144, %v142
    %v233 = vpack.c.b16 %v147, %v145
    %v234 = vpack.c.b16 %v148, %v146
    %v235 = vpack.c.b16 %v151, %v149
    %v236 = vpack.c.b16 %v152, %v150
    %v237 = vpack.c.b16 %v155, %v153
    %v238 = vpack.c.b16 %v156, %v154
    %v239 = vpack.c.b16 %v159, %v157
    %v240 = vpack.c.b16 %v160, %v158
    %v241 = vpack.c.b16 %v163, %v161
    %v242 = vpack.c.b16 %v164, %v162
    %v243 = vpack.c.b16 %v167, %v165
    %v244 = vpack.c.b16 %v168, %v166
    %v245 = vpack.c.b16 %v171, %v169
    %v246 = vpack.c.b16 %v172, %v170
    %v247 = vpack.c.b16 %v175, %v173
    %v248 = vpack.c.b16 %v176, %v174
    %v249 = vpack.c.b16 %v179, %v177
    %v250 = vpack.c.b16 %v180, %v178
    %v251 = vpack.c.b16 %v183, %v181
    %v252 = vpack.c.b16 %v184, %v182
    %v253 = vpack.c.b16 %v187, %v185
    %v254 = vpack.c.b16 %v188, %v186
    %v255 = vpack.c.b16 %v191, %v189
    %v256 = vpack.c.b16 %v192, %v190
    %v257 = vpack.c.b16 %v195, %v193
    %v258 = vpack.c.b16 %v196, %v194
    %v259 = vpack.c.b16 %v199, %v197
    %v260 = vpack.c.b16 %v200, %v198
    %v261 = vpack.c.b16 %v203, %v201
    %v262 = vpack.c.b16 %v204, %v202
    %v263 = vpack.c.b16 %v207, %v205
    %v264 = vpack.c.b16 %v208, %v206
    %v265 = vpack.c.b16 %v211, %v209
    %v266 = vpack.c.b16 %v212, %v210
    %v267 = vpack.c.b16 %v215, %v213
    %v268 = vpack.c.b16 %v216, %v214
    %v269 = vpack.c.b16 %v219, %v217
    %v270 = vpack.c.b16 %v220, %v218
    %v271 = vpack.c.b16 %v223, %v221
    %v272 = vpack.c.b16 %v224, %v222
    %v273 = vpack.c.b16 %v227, %v225
    %v274 = vpack.c.b16 %v228, %v226
    %v275 = vpack.c.b16 %v229, %v229
    %v276 = vpack.c.b16 %v230, %v230
    %vm321 = vcmask 801792
    %v323 = vsel %vm321, %v48, 0
    %vm325 = vcmask 1040384
    %v327 = vsel %vm325, %v275, 0
    %v330 = vsel %vm325, %v276, 0
    %332 = vmatprep.subr.bf16.mxu0 %v246
    %333 = vmatpush1.bf16.msra.mxu0 %v245
    %334 = vmatprep.subr.bf16.mxu0 %v244
    %335 = vmatpush1.bf16.msra.mxu0 %v243
    %336 = vmatprep.subr.bf16.mxu0 %v242
    %337 = vmatpush1.bf16.msra.mxu0 %v241
    %338 = vmatprep.subr.bf16.mxu0 %v240
    %339 = vmatpush1.bf16.msra.mxu0 %v239
    %340 = vmatprep.subr.bf16.mxu0 %v238
    %341 = vmatpush1.bf16.msra.mxu0 %v237
    %342 = vmatprep.subr.bf16.mxu0 %v236
    %343 = vmatpush1.bf16.msra.mxu0 %v235
    %344 = vmatprep.subr.bf16.mxu0 %v234
    %345 = vmatpush1.bf16.msra.mxu0 %v233
    %346 = vmatprep.subr.bf16.mxu0 %v232
    %347 = vmatpush1.bf16.msra.mxu0 %v231
    %348 = vmatprep.subr.bf16.mxu0 %v262
    %349 = vmatpush2.bf16.msra.mxu0 %v261
    %350 = vmatprep.subr.bf16.mxu0 %v260
    %351 = vmatpush2.bf16.msra.mxu0 %v259
    %352 = vmatprep.subr.bf16.mxu0 %v258
    %353 = vmatpush2.bf16.msra.mxu0 %v257
    %354 = vmatprep.subr.bf16.mxu0 %v256
    %355 = vmatpush2.bf16.msra.mxu0 %v255
    %356 = vmatprep.subr.bf16.mxu0 %v254
    %357 = vmatpush2.bf16.msra.mxu0 %v253
    %358 = vmatprep.subr.bf16.mxu0 %v252
    %359 = vmatpush2.bf16.msra.mxu0 %v251
    %360 = vmatprep.subr.bf16.mxu0 %v250
    %361 = vmatpush2.bf16.msra.mxu0 %v249
    %362 = vmatprep.subr.bf16.mxu0 %v248
    %363 = vmatpush2.bf16.msra.mxu0 %v247
    %364 = vmatprep.mubr.bf16.mxu0 %v47
    %365 = vmatmul.mubr.bf16.gmra.mxu0 %v46
    %v366 = vpop.f32.mrf.mxu0
    %v367 = vadd.f32 %v95, %v366
    %v368 = vpop.f32.mrf.mxu0
    %v369 = vadd.f32 %v95, %v368
    %v370 = vpop.f32.mrf.mxu0
    %v371 = vpop.f32.mrf.mxu0
    %372 = vdwg.mxu0
    %373 = vmatprep.subr.bf16.mxu0 0
    %374 = vmatpush1.bf16.msra.mxu0 0
    %375 = vmatprep.subr.bf16.mxu0 %v330
    %376 = vmatpush1.bf16.msra.mxu0 %v327
    %377 = vmatprep.subr.bf16.mxu0 %v274
    %378 = vmatpush1.bf16.msra.mxu0 %v273
    %379 = vmatprep.subr.bf16.mxu0 %v272
    %380 = vmatpush1.bf16.msra.mxu0 %v271
    %381 = vmatprep.subr.bf16.mxu0 %v270
    %382 = vmatpush1.bf16.msra.mxu0 %v269
    %383 = vmatprep.subr.bf16.mxu0 %v268
    %384 = vmatpush1.bf16.msra.mxu0 %v267
    %385 = vmatprep.subr.bf16.mxu0 %v266
    %386 = vmatpush1.bf16.msra.mxu0 %v265
    %387 = vmatprep.subr.bf16.mxu0 %v264
    %388 = vmatpush1.bf16.msra.mxu0 %v263
    %389 = vmatprep.subr.bf16.mxu0 0
    %390 = vmatpush2.bf16.msra.mxu0 0
    %391 = vmatprep.subr.bf16.mxu0 0
    %392 = vmatpush2.bf16.msra.mxu0 0
    %393 = vmatprep.subr.bf16.mxu0 0
    %394 = vmatpush2.bf16.msra.mxu0 0
    %395 = vmatprep.subr.bf16.mxu0 0
    %396 = vmatpush2.bf16.msra.mxu0 0
    %397 = vmatprep.subr.bf16.mxu0 0
    %398 = vmatpush2.bf16.msra.mxu0 0
    %399 = vmatprep.subr.bf16.mxu0 0
    %400 = vmatpush2.bf16.msra.mxu0 0
    %401 = vmatprep.subr.bf16.mxu0 0
    %402 = vmatpush2.bf16.msra.mxu0 0
    %403 = vmatprep.subr.bf16.mxu0 0
    %404 = vmatpush2.bf16.msra.mxu0 0
    %405 = vmatprep.mubr.bf16.mxu0 0
    %406 = vmatmul.mubr.bf16.gmra.mxu0 %v323
    %v407 = vpop.f32.mrf.mxu0
    %v408 = vadd.f32 %v367, %v407
    %v409 = vpop.f32.mrf.mxu0
    %v410 = vadd.f32 %v369, %v409
    %v411 = vpop.f32.mrf.mxu0
    %v412 = vpop.f32.mrf.mxu0
    %413 = vdwg.mxu0
    %s414 = sld [smem:[#allocation2 + $0x3]]
    %v415 = vstv %s414
    %v416 = vmul.f32 %v408, %v415
    %v417 = vmul.f32 %v410, %v415
    %s418 = sld [smem:[#allocation2 + $0x4]]
    %v419 = vstv %s418
    %v420 = vadd.f32 %v416, %v419
    %v421 = vadd.f32 %v417, %v419
    %v422 = vmax.f32 %v420, 0.0
    %v423 = vmax.f32 %v421, 0.0
    %v424 = vpack.c.bf16 %v422, %v422
    %v425 = vpack.c.bf16 %v423, %v423
    %v426 = vld [vmem:[%s3] sm:$0xf]
    %v427 = vld [vmem:[%s3 + $0x4] sm:$0xf]
    %v428 = vld [vmem:[%s3 + $0x8] sm:$0xf]
    %v429 = vld [vmem:[%s3 + $0xc] sm:$0xf]
    %v430 = vld [vmem:[%s3 + $0x10] sm:$0xf]
    %v431 = vld [vmem:[%s3 + $0x14] sm:$0xf]
    %v432 = vld [vmem:[%s3 + $0x18] sm:$0xf]
    %v433 = vld [vmem:[%s3 + $0x1c] sm:$0xf]
    %v434 = vld [vmem:[%s3 + $0x20] sm:$0xf]
    %v435 = vld [vmem:[%s3 + $0x24] sm:$0xf]
    %v436 = vld [vmem:[%s3 + $0x28] sm:$0xf]
    %v437 = vld [vmem:[%s3 + $0x2c] sm:$0xf]
    %v438 = vld [vmem:[%s3 + $0x30] sm:$0xf]
    %v439 = vld [vmem:[%s3 + $0x34] sm:$0xf]
    %v440 = vld [vmem:[%s3 + $0x38] sm:$0xf]
    %v441 = vld [vmem:[%s3 + $0x3c] sm:$0xf]
    %v442 = vld [vmem:[%s3 + $0x40] sm:$0xf]
    %v443 = vld [vmem:[%s3 + $0x44] sm:$0xf]
    %v444 = vld [vmem:[%s3 + $0x48] sm:$0xf]
    %v445 = vld [vmem:[%s3 + $0x4c] sm:$0xf]
    %v446 = vld [vmem:[%s3 + $0x50] sm:$0xf]
    %v447 = vld [vmem:[%s3 + $0x54] sm:$0x1]
    %s448 = sld [smem:[#allocation2 + $0x5]]
    %v449 = vstv %s448
    %v472 = vunpack.c.l.b16 %v426
    %v473 = vunpack.c.l.b16 %v427
    %v474 = vunpack.c.l.b16 %v428
    %v475 = vunpack.c.l.b16 %v429
    %v476 = vunpack.c.l.b16 %v430
    %v477 = vunpack.c.l.b16 %v431
    %v478 = vunpack.c.l.b16 %v432
    %v479 = vunpack.c.l.b16 %v433
    %v480 = vunpack.c.l.b16 %v434
    %v481 = vunpack.c.l.b16 %v435
    %v482 = vunpack.c.l.b16 %v436
    %v483 = vunpack.c.l.b16 %v437
    %v484 = vunpack.c.l.b16 %v438
    %v485 = vunpack.c.l.b16 %v439
    %v486 = vunpack.c.l.b16 %v440
    %v487 = vunpack.c.l.b16 %v441
    %v488 = vunpack.c.l.b16 %v442
    %v489 = vunpack.c.l.b16 %v443
    %v490 = vunpack.c.l.b16 %v444
    %v491 = vunpack.c.l.b16 %v445
    %v492 = vunpack.c.l.b16 %v446
    %v493 = vunpack.c.l.b16 %v447
    %v494 = vpack.c.b16 %v473, %v472
    %v495 = vpack.c.b16 %v475, %v474
    %v496 = vpack.c.b16 %v477, %v476
    %v497 = vpack.c.b16 %v479, %v478
    %v498 = vpack.c.b16 %v481, %v480
    %v499 = vpack.c.b16 %v483, %v482
    %v500 = vpack.c.b16 %v485, %v484
    %v501 = vpack.c.b16 %v487, %v486
    %v502 = vpack.c.b16 %v489, %v488
    %v503 = vpack.c.b16 %v491, %v490
    %v504 = vpack.c.b16 %v493, %v492
    %vm515 = vcmask 343040
    %v517 = vsel %vm515, %v425, 0
    %vm519 = vcmask 1044480
    %v521 = vsel %vm519, %v504, 0
    %523 = vmatprep.subr.bf16.mxu0 0
    %524 = vmatpush1.bf16.msra.mxu0 %v501
    %525 = vmatprep.subr.bf16.mxu0 0
    %526 = vmatpush1.bf16.msra.mxu0 %v500
    %527 = vmatprep.subr.bf16.mxu0 0
    %528 = vmatpush1.bf16.msra.mxu0 %v499
    %529 = vmatprep.subr.bf16.mxu0 0
    %530 = vmatpush1.bf16.msra.mxu0 %v498
    %531 = vmatprep.subr.bf16.mxu0 0
    %532 = vmatpush1.bf16.msra.mxu0 %v497
    %533 = vmatprep.subr.bf16.mxu0 0
    %534 = vmatpush1.bf16.msra.mxu0 %v496
    %535 = vmatprep.subr.bf16.mxu0 0
    %536 = vmatpush1.bf16.msra.mxu0 %v495
    %537 = vmatprep.subr.bf16.mxu0 0
    %538 = vmatpush1.bf16.msra.mxu0 %v494
    %539 = vmatprep.subr.bf16.mxu0 0
    %540 = vmatpush2.bf16.msra.mxu0 0
    %541 = vmatprep.subr.bf16.mxu0 0
    %542 = vmatpush2.bf16.msra.mxu0 0
    %543 = vmatprep.subr.bf16.mxu0 0
    %544 = vmatpush2.bf16.msra.mxu0 0
    %545 = vmatprep.subr.bf16.mxu0 0
    %546 = vmatpush2.bf16.msra.mxu0 0
    %547 = vmatprep.subr.bf16.mxu0 0
    %548 = vmatpush2.bf16.msra.mxu0 0
    %549 = vmatprep.subr.bf16.mxu0 0
    %550 = vmatpush2.bf16.msra.mxu0 %v521
    %551 = vmatprep.subr.bf16.mxu0 0
    %552 = vmatpush2.bf16.msra.mxu0 %v503
    %553 = vmatprep.subr.bf16.mxu0 0
    %554 = vmatpush2.bf16.msra.mxu0 %v502
    %555 = vmatprep.mubr.bf16.mxu0 %v517
    %556 = vmatmul.mubr.bf16.gmra.mxu0 %v424
    %v557 = vpop.f32.mrf.mxu0
    %v558 = vadd.f32 %v449, %v557
    %v559 = vpop.f32.mrf.mxu0
    %v560 = vpop.f32.mrf.mxu0
    %v561 = vpop.f32.mrf.mxu0
    %562 = vdwg.mxu0
    %s563 = sld [smem:[#allocation2 + $0x6]]
    %v564 = vstv %s563
    %v565 = vmul.f32 %v558, %v564
    %s566 = sld [smem:[#allocation2 + $0x7]]
    %v567 = vstv %s566
    %v568 = vadd.f32 %v565, %v567
    %v569 = vmax.f32 %v568, 0.0
    %v570 = vpack.c.bf16 %v569, %v569
    %v571 = vld [vmem:[%s4] sm:$0xf]
    %v572 = vld [vmem:[%s4 + $0x4] sm:$0xf]
    %v573 = vld [vmem:[%s4 + $0x8] sm:$0xf]
    %v574 = vld [vmem:[%s4 + $0xc] sm:$0xf]
    %v575 = vld [vmem:[%s4 + $0x10] sm:$0xf]
    %v576 = vld [vmem:[%s4 + $0x14] sm:$0xf]
    %v577 = vld [vmem:[%s4 + $0x18] sm:$0xf]
    %v578 = vld [vmem:[%s4 + $0x1c] sm:$0xf]
    %v579 = vld [vmem:[%s4 + $0x20] sm:$0xf]
    %v580 = vld [vmem:[%s4 + $0x24] sm:$0x7]
    %s581 = sld [smem:[#allocation2 + $0x8]]
    %v582 = vstv %s581
    %v593 = vunpack.c.l.b16 %v571
    %v594 = vunpack.c.l.b16 %v572
    %v595 = vunpack.c.l.b16 %v573
    %v596 = vunpack.c.l.b16 %v574
    %v597 = vunpack.c.l.b16 %v575
    %v598 = vunpack.c.l.b16 %v576
    %v599 = vunpack.c.l.b16 %v577
    %v600 = vunpack.c.l.b16 %v578
    %v601 = vunpack.c.l.b16 %v579
    %v602 = vunpack.c.l.b16 %v580
    %v603 = vpack.c.b16 %v594, %v593
    %v604 = vpack.c.b16 %v596, %v595
    %v605 = vpack.c.b16 %v598, %v597
    %v606 = vpack.c.b16 %v600, %v599
    %v607 = vpack.c.b16 %v602, %v601
    %vm612 = vcmask 637952
    %v614 = vsel %vm612, %v570, 0
    %vm616 = vcmask 1046528
    %v618 = vsel %vm616, %v607, 0
    %620 = vmatprep.subr.bf16.mxu0 0
    %621 = vmatpush1.bf16.msra.mxu0 0
    %622 = vmatprep.subr.bf16.mxu0 0
    %623 = vmatpush1.bf16.msra.mxu0 0
    %624 = vmatprep.subr.bf16.mxu0 0
    %625 = vmatpush1.bf16.msra.mxu0 0
    %626 = vmatprep.subr.bf16.mxu0 0
    %627 = vmatpush1.bf16.msra.mxu0 %v618
    %628 = vmatprep.subr.bf16.mxu0 0
    %629 = vmatpush1.bf16.msra.mxu0 %v606
    %630 = vmatprep.subr.bf16.mxu0 0
    %631 = vmatpush1.bf16.msra.mxu0 %v605
    %632 = vmatprep.subr.bf16.mxu0 0
    %633 = vmatpush1.bf16.msra.mxu0 %v604
    %634 = vmatprep.subr.bf16.mxu0 0
    %635 = vmatpush1.bf16.msra.mxu0 %v603
    %636 = vmatprep.subr.bf16.mxu0 0
    %637 = vmatpush2.bf16.msra.mxu0 0
    %638 = vmatprep.subr.bf16.mxu0 0
    %639 = vmatpush2.bf16.msra.mxu0 0
    %640 = vmatprep.subr.bf16.mxu0 0
    %641 = vmatpush2.bf16.msra.mxu0 0
    %642 = vmatprep.subr.bf16.mxu0 0
    %643 = vmatpush2.bf16.msra.mxu0 0
    %644 = vmatprep.subr.bf16.mxu0 0
    %645 = vmatpush2.bf16.msra.mxu0 0
    %646 = vmatprep.subr.bf16.mxu0 0
    %647 = vmatpush2.bf16.msra.mxu0 0
    %648 = vmatprep.subr.bf16.mxu0 0
    %649 = vmatpush2.bf16.msra.mxu0 0
    %650 = vmatprep.subr.bf16.mxu0 0
    %651 = vmatpush2.bf16.msra.mxu0 0
    %652 = vmatprep.mubr.bf16.mxu0 0
    %653 = vmatmul.mubr.bf16.gmra.mxu0 %v614
    %v654 = vpop.f32.mrf.mxu0
    %v655 = vadd.f32 %v582, %v654
    %v656 = vpop.f32.mrf.mxu0
    %v657 = vpop.f32.mrf.mxu0
    %v658 = vpop.f32.mrf.mxu0
    %659 = vdwg.mxu0
    %s660 = sld [smem:[#allocation2 + $0x9]]
    %v661 = vstv %s660
    %v662 = vmul.f32 %v655, %v661
    %s663 = sld [smem:[#allocation2 + $0xa]]
    %v664 = vstv %s663
    %v665 = vadd.f32 %v662, %v664
    %v666 = vmax.f32 %v665, 0.0
    %s667 = sld [smem:[#allocation2 + $0x1]]
    %v668 = vstv %s667
    %v669 = vmul.f32 %v666, %v668
    %v670 = vlaneseq
    %v671 = vand.u32 %v670, 127
    %vm672 = vcmp.lt.s32.totalorder %v671, 32
    %v673 = vsel %vm672, %v669, 0.0
    %674 = vst [vmem:[#allocation5] sm:$0xff] %v673
    // Predicated region
    $region26: #{tpu_custom_call.1} parent=1 // pred_check
      _
    $region27: #{tpu_custom_call.1} parent=1 // pred_check_branch
      %676 = sbr.rel (0) target = $region29
    $region28: #{tpu_custom_call.1} parent=1 // pred_region
      %s678 = ssub.s32 128, 128
      %679 = vsyncadd [#allocation3], %s678
      %s681 = sshll.u32 [#allocation5], 4
      %s682 = int_to_ptr.vmem [resolvable:$true] %s681
      %684 = dma.vmem_to_hbm [thread:$0]  %s682, 128, %s5, [#allocation3]
    $region29: #{tpu_custom_call.1} parent=1 // pred_fallthru
      _
    // Predicated region
    $region30: #{tpu_custom_call.1} parent=1 // pred_check
      _
    $region31: #{tpu_custom_call.1} parent=1 // pred_check_branch
      %686 = sbr.rel (0) target = $region33
    $region32: #{tpu_custom_call.1} parent=1 // pred_region
      %687 = dma.done [#allocation3], 128
    $region33: #{tpu_custom_call.1} parent=1 // pred_fallthru
      _
    %688 = vsyncpa [#allocation3], 1
    %689 = vsyncpa [#allocation4], 1

</llo_original>
